<compile_context>
chip_gen: v7x
topology: tpu7x:2x2x1
jax: 0.10.0
libtpu: 0.0.40
codegen_flags: <defaults>
</compile_context>

<pallas_src>
import functools
from typing import NamedTuple

import jax
import jax.numpy as jnp
from jax import lax
from jax.experimental import pallas as pl
from jax.experimental.pallas import tpu as pltpu


# ---------------------------------------------------------------------------
# Kernel
# ---------------------------------------------------------------------------
def _conv_relu_kernel(x_ref, w_ref, b_ref, o_ref, *, stride):
    """One batch block per grid step.

    x_ref: (Bb, Hp, Wp*Cin)       zero-padded, channel-flattened input slab
    w_ref: (KH*Wp*Cin, Wo*Cout)   Toeplitz-expanded conv weight
    b_ref: (1, Wo*Cout)           bias tiled to the lane-dense output width
    o_ref: (Bb, Ho, Wo*Cout)      lane-dense output slab
    """
    Bb, Hp, WpC = x_ref.shape
    _, Ho, WoC = o_ref.shape
    KH = w_ref.shape[0] // WpC

    x = x_ref[...]                                    # (Bb, Hp, Wp*Cin)

    # KH accumulating matmuls instead of one lane-concatenated K=KH*Wp*Cin dot.
    # The weight row slices at offsets dy*WpC are sublane-aligned (WpC % 8 == 0)
    # -> free views; no cross-lane concat relayout in the kernel body.
    acc = jnp.zeros((Bb * Ho, WoC), dtype=jnp.float32)
    for dy in range(KH):                              # static unroll, KH small
        if stride == 1:
            xs = x[:, dy:dy + Ho, :]
        else:
            xs = lax.slice(x, (0, dy, 0),
                           (Bb, dy + (Ho - 1) * stride + 1, WpC),
                           (1, stride, 1))
        xs = xs.reshape(Bb * Ho, WpC)                 # merge batch into MXU rows
        acc = acc + jnp.dot(xs, w_ref[dy * WpC:(dy + 1) * WpC, :],
                            preferred_element_type=jnp.float32)

    # Epilogue on the lane-dense slab: bias add + ReLU, full-width store.
    acc = jnp.maximum(acc + b_ref[...], 0.0)
    o_ref[...] = acc.reshape(Bb, Ho, WoC).astype(o_ref.dtype)


# ---------------------------------------------------------------------------
# One-time parameter preparation (hoisted out of the per-forward path)
# ---------------------------------------------------------------------------
class Conv2dBlockParams(NamedTuple):
    w_toep: jax.Array   # (KH*Wp*Cin, Wo*Cout)
    b_lane: jax.Array   # (1, Wo*Cout)


def _toeplitz_weight(weight, Wp, Wo, stride):
    """Expand (Cout, Cin, KH, KW) conv weight into (KH*Wp*Cin, Wo*Cout).

    w_toep[(dy*Wp + ix)*Cin + c, ox*Cout + co] =
        weight[co, c, dy, ix - ox*stride]  if 0 <= ix - ox*stride < KW else 0
    """
    Cout, Cin, KH, KW = weight.shape
    w_hwio = jnp.transpose(weight, (2, 3, 1, 0))          # (KH, KW, Cin, Cout)
    ix = jnp.arange(Wp)
    ox = jnp.arange(Wo)
    dx = ix[:, None] - ox[None, :] * stride               # (Wp, Wo)
    valid = (dx >= 0) & (dx < KW)
    dx_c = jnp.clip(dx, 0, KW - 1)
    wg = w_hwio[:, dx_c]                                  # (KH, Wp, Wo, Cin, Cout)
    wg = jnp.where(valid[None, :, :, None, None], wg, 0.0)
    wg = jnp.transpose(wg, (0, 1, 3, 2, 4))               # (KH, Wp, Cin, Wo, Cout)
    return wg.reshape(KH * Wp * Cin, Wo * Cout)


def prepare_conv2d_block(weight, bias, *, image_hw, stride=1, padding=1,
                         use_bf16_matmul=False):
    """Per-weight-update preparation: Toeplitz weight + lane-dense bias."""
    H, W = image_hw
    Cout, Cin, KH, KW = weight.shape
    Hp, Wp = H + 2 * padding, W + 2 * padding
    Wo = (Wp - KW) // stride + 1

    # Gate the Toeplitz path: weight VMEM ~ W^2*Cin*Cout (double-buffered by
    # the pipeline) and zero-FLOP inflation ~ Wp/KW.  v7x (64 MiB VMEM) hits
    # the wall first.
    w_bytes = 4 * KH * Wp * Cin * Wo * Cout
    if w_bytes > 8 * 1024 * 1024 or (Wp / KW) > 16:
        # TODO(synk): switch to tiled K=KH*KW*Cin im2col matmul with a
        # Wo-tiled grid for this regime.
        raise NotImplementedError(
            "Toeplitz conv path disabled for this size; needs tiled im2col.")

    w_toep = _toeplitz_weight(weight, Wp, Wo, stride)     # (KH*Wp*Cin, Wo*Cout)
    b_lane = jnp.tile(bias, Wo).reshape(1, Wo * Cout)     # lane-dense bias
    if use_bf16_matmul:
        w_toep = w_toep.astype(jnp.bfloat16)
    return Conv2dBlockParams(w_toep=w_toep, b_lane=b_lane)


# ---------------------------------------------------------------------------
# Forward
# ---------------------------------------------------------------------------
def _pick_batch_block(N, Ho, *, target_rows=256, min_grid_steps=2):
    """Batch-block so B_blk*Ho fills the MXU (128 rows v5e / 256 v6e-v7x) while
    keeping >= 2 grid steps so v7x can shard across both TensorCores."""
    b = max(1, target_rows // max(Ho, 1))
    if N >= min_grid_steps:
        b = min(b, N // min_grid_steps)
    b = max(1, min(b, N))
    while N % b:          # require an even split of the batch
        b -= 1
    return b


def conv2d_block_forward(x_nchw, params, *, kernel_size, stride=1, padding=1,
                         use_bf16_matmul=False):
    """Forward pass of Conv2dBlock (zero-pad -> conv -> bias -> ReLU), NCHW."""
    N, Cin, H, W = x_nchw.shape
    KH, KW = kernel_size
    Hp, Wp = H + 2 * padding, W + 2 * padding
    Ho = (Hp - KH) // stride + 1
    Wo = (Wp - KW) // stride + 1
    Cout = params.b_lane.shape[1] // Wo

    # Layout plumbing: NCHW -> zero-padded, channel-flattened (N, Hp, Wp*Cin).
    x_nhwc = jnp.transpose(x_nchw, (0, 2, 3, 1))
    x_pad = jnp.pad(x_nhwc,
                    ((0, 0), (padding, padding), (padding, padding), (0, 0)))
    x_flat = x_pad.reshape(N, Hp, Wp * Cin)
    if use_bf16_matmul:
        x_flat = x_flat.astype(jnp.bfloat16)

    B_blk = _pick_batch_block(N, Ho)
    grid = (N // B_blk,)

    kernel = functools.partial(_conv_relu_kernel, stride=stride)

    out_slab = pl.pallas_call(
        kernel,
        out_shape=jax.ShapeDtypeStruct((N, Ho, Wo * Cout), x_nchw.dtype),
        grid_spec=pltpu.PrefetchScalarGridSpec(
            num_scalar_prefetch=0,
            grid=grid,
            in_specs=[
                pl.BlockSpec((B_blk, Hp, Wp * Cin), lambda n: (n, 0, 0)),
                # Weight/bias are grid-invariant; default double-buffering
                # costs ~2x110 KB here (negligible).  pipeline_mode could drop
                # it to a single buffer if VMEM ever becomes the constraint.
                pl.BlockSpec((KH * Wp * Cin, Wo * Cout), lambda n: (0, 0)),
                pl.BlockSpec((1, Wo * Cout), lambda n: (0, 0)),
            ],
            out_specs=pl.BlockSpec((B_blk, Ho, Wo * Cout), lambda n: (n, 0, 0)),
        ),
        compiler_params=pltpu.CompilerParams(
            dimension_semantics=("parallel",)),
    )(x_flat, params.w_toep, params.b_lane)

    # TODO(synk): emit NHWC (or Cout-major Toeplitz columns) when downstream
    # consumers accept it, to elide this final transpose back to NCHW.
    out_nhwc = out_slab.reshape(N, Ho, Wo, Cout)
    return jnp.transpose(out_nhwc, (0, 3, 1, 2))


# ---------------------------------------------------------------------------
# Reference & test
# ---------------------------------------------------------------------------
def _reference(x_nchw, weight, bias, *, stride=1, padding=1):
    """Pure-JAX reference: ZeroPad2d -> Conv2d -> bias -> ReLU (NCHW)."""
    out = lax.conv_general_dilated(
        x_nchw, weight,
        window_strides=(stride, stride),
        padding=[(padding, padding), (padding, padding)],
        dimension_numbers=("NCHW", "OIHW", "NCHW"))
    out = out + bias.reshape(1, -1, 1, 1)
    return jnp.maximum(out, 0.0)


if __name__ == "__main__":
    key = jax.random.PRNGKey(0)
    k_x, k_w, k_b = jax.random.split(key, 3)

    N, Cin, H, W = 2, 4, 16, 16
    Cout, KH, KW = 8, 3, 3
    stride, padding = 1, 1

    x = jax.random.normal(k_x, (N, Cin, H, W), dtype=jnp.float32)
    # Deterministic parameter init (synthetic, roughly PyTorch-uniform scale).
    fan_in = Cin * KH * KW
    bound = 1.0 / (fan_in ** 0.5)
    weight = jax.random.uniform(k_w, (Cout, Cin, KH, KW), jnp.float32,
                                -bound, bound)
    bias = jax.random.uniform(k_b, (Cout,), jnp.float32, -bound, bound)

    # Prepared once per weight update, not per forward call.
    params = prepare_conv2d_block(weight, bias, image_hw=(H, W),
                                  stride=stride, padding=padding)

    fwd = jax.jit(functools.partial(conv2d_block_forward,
                                    kernel_size=(KH, KW),
                                    stride=stride, padding=padding))
    out = jax.block_until_ready(fwd(x, params))

    ref = _reference(x, weight, bias, stride=stride, padding=padding)
    assert out.shape == (N, Cout, H, W), out.shape
    # f32 MXU path; with use_bf16_matmul=True relax this to ~1e-2 abs.
    assert jnp.allclose(out, ref, atol=1e-5, rtol=1e-5), "mismatch vs reference"

    print("KERNEL_OK")
</pallas_src>

<mosaic_0001>
module attributes {stable_mosaic.version = 11 : i64} {
  func.func @_conv_relu_kernel(%arg0: i32, %arg1: memref<1x18x72xf32, #tpu.memory_space<vmem>>, %arg2: memref<216x128xf32, #tpu.memory_space<vmem>>, %arg3: memref<1x128xf32, #tpu.memory_space<vmem>>, %arg4: memref<1x16x128xf32, #tpu.memory_space<vmem>>) attributes {dimension_semantics = [#tpu.dimension_semantics<parallel>], iteration_bounds = array<i64: 2>, scalar_prefetch = 0 : i64, scratch_operands = 0 : i64, tpu.core_type = #tpu.core_type<tc>, window_params = [{transform_indices = @transform_0, window_bounds = array<i64: 1, 18, 72>}, {pipeline_mode = #tpu.pipeline_mode<synchronous>, transform_indices = @transform_1, window_bounds = array<i64: 216, 128>}, {pipeline_mode = #tpu.pipeline_mode<synchronous>, transform_indices = @transform_2, window_bounds = array<i64: 1, 128>}, {transform_indices = @transform_3, window_bounds = array<i64: 1, 16, 128>}]} {
    %c0 = arith.constant 0 : index
    %c0_0 = arith.constant 0 : index
    %c0_1 = arith.constant 0 : index
    %0 = vector.load %arg1[%c0, %c0_0, %c0_1] : memref<1x18x72xf32, #tpu.memory_space<vmem>>, vector<1x18x72xf32>
    %cst = arith.constant 0.000000e+00 : f32
    %1 = vector.broadcast %cst : f32 to vector<16x128xf32>
    %2 = vector.extract_strided_slice %0 {offsets = [0, 0, 0], sizes = [1, 16, 72], strides = [1, 1, 1]} : vector<1x18x72xf32> to vector<1x16x72xf32>
    %3 = vector.shape_cast %2 : vector<1x16x72xf32> to vector<16x72xf32>
    %c0_2 = arith.constant 0 : index
    %c0_3 = arith.constant 0 : index
    %4 = vector.load %arg2[%c0_2, %c0_3] : memref<216x128xf32, #tpu.memory_space<vmem>>, vector<72x128xf32>
    %cst_4 = arith.constant dense<0.000000e+00> : vector<16x128xf32>
    %5 = tpu.matmul %3, %4, %cst_4 {dimension_numbers = #tpu.dot_dimension_numbers<[1], [0], [0], [1], [0, 0, 1, 1], [], []>} : vector<16x72xf32>, vector<72x128xf32>, vector<16x128xf32> -> vector<16x128xf32>
    %6 = arith.addf %1, %5 : vector<16x128xf32>
    %7 = vector.extract_strided_slice %0 {offsets = [0, 1, 0], sizes = [1, 16, 72], strides = [1, 1, 1]} : vector<1x18x72xf32> to vector<1x16x72xf32>
    %8 = vector.shape_cast %7 : vector<1x16x72xf32> to vector<16x72xf32>
    %c72 = arith.constant 72 : index
    %c0_5 = arith.constant 0 : index
    %9 = vector.load %arg2[%c72, %c0_5] : memref<216x128xf32, #tpu.memory_space<vmem>>, vector<72x128xf32>
    %cst_6 = arith.constant dense<0.000000e+00> : vector<16x128xf32>
    %10 = tpu.matmul %8, %9, %cst_6 {dimension_numbers = #tpu.dot_dimension_numbers<[1], [0], [0], [1], [0, 0, 1, 1], [], []>} : vector<16x72xf32>, vector<72x128xf32>, vector<16x128xf32> -> vector<16x128xf32>
    %11 = arith.addf %6, %10 : vector<16x128xf32>
    %12 = vector.extract_strided_slice %0 {offsets = [0, 2, 0], sizes = [1, 16, 72], strides = [1, 1, 1]} : vector<1x18x72xf32> to vector<1x16x72xf32>
    %13 = vector.shape_cast %12 : vector<1x16x72xf32> to vector<16x72xf32>
    %c144 = arith.constant 144 : index
    %c0_7 = arith.constant 0 : index
    %14 = vector.load %arg2[%c144, %c0_7] : memref<216x128xf32, #tpu.memory_space<vmem>>, vector<72x128xf32>
    %cst_8 = arith.constant dense<0.000000e+00> : vector<16x128xf32>
    %15 = tpu.matmul %13, %14, %cst_8 {dimension_numbers = #tpu.dot_dimension_numbers<[1], [0], [0], [1], [0, 0, 1, 1], [], []>} : vector<16x72xf32>, vector<72x128xf32>, vector<16x128xf32> -> vector<16x128xf32>
    %16 = arith.addf %11, %15 : vector<16x128xf32>
    %c0_9 = arith.constant 0 : index
    %c0_10 = arith.constant 0 : index
    %17 = vector.load %arg3[%c0_9, %c0_10] : memref<1x128xf32, #tpu.memory_space<vmem>>, vector<1x128xf32>
    %18 = vector.broadcast %17 : vector<1x128xf32> to vector<16x128xf32>
    %19 = arith.addf %16, %18 : vector<16x128xf32>
    %cst_11 = arith.constant 0.000000e+00 : f32
    %20 = vector.broadcast %cst_11 : f32 to vector<16x128xf32>
    %21 = arith.maximumf %19, %20 : vector<16x128xf32>
    %22 = vector.shape_cast %21 : vector<16x128xf32> to vector<1x16x128xf32>
    %c0_12 = arith.constant 0 : index
    %c0_13 = arith.constant 0 : index
    %c0_14 = arith.constant 0 : index
    %23 = vector.load %arg4[%c0_12, %c0_13, %c0_14] : memref<1x16x128xf32, #tpu.memory_space<vmem>>, vector<1x16x128xf32>
    tpu.vector_store %arg4[%c0_12, %c0_13, %c0_14], %22 {strides = array<i32>} : memref<1x16x128xf32, #tpu.memory_space<vmem>>, vector<1x16x128xf32>,
    return
  }
  func.func @transform_0(%arg0: i32) -> (i32, i32, i32) {
    %c0_i32 = arith.constant 0 : i32
    %c0_i32_0 = arith.constant 0 : i32
    %c0_i32_1 = arith.constant 0 : i32
    return %arg0, %c0_i32, %c0_i32_0 : i32, i32, i32
  }
  func.func @transform_1(%arg0: i32) -> (i32, i32) {
    %c0_i32 = arith.constant 0 : i32
    %c0_i32_0 = arith.constant 0 : i32
    %c0_i32_1 = arith.constant 0 : i32
    return %c0_i32, %c0_i32_0 : i32, i32
  }
  func.func @transform_2(%arg0: i32) -> (i32, i32) {
    %c0_i32 = arith.constant 0 : i32
    %c0_i32_0 = arith.constant 0 : i32
    %c0_i32_1 = arith.constant 0 : i32
    return %c0_i32, %c0_i32_0 : i32, i32
  }
  func.func @transform_3(%arg0: i32) -> (i32, i32, i32) {
    %c0_i32 = arith.constant 0 : i32
    %c0_i32_0 = arith.constant 0 : i32
    %c0_i32_1 = arith.constant 0 : i32
    return %arg0, %c0_i32, %c0_i32_0 : i32, i32, i32
  }
}

</mosaic_0001>

<llo_original>
// kernel: conv2d_block_forward.1
$region0: #{conv2d_block_forward.1}
  #allocation0 [shape = 'u32[]', space=smem, size = 0x4, offset = 0x4, fixed_abs, tag = 'smem constant byte address 0x4 - core index']
  #allocation1 [shape = 'u32[144,128]{1,0:T(1,128)}', space=vmem, size = 0x12000, scoped, tag = 'internal scratch']
  %s0 = inlined_call_operand.vmem [shape: f32[2,18,72], index: 0, kind: input, shape index: {}]
  %s1 = inlined_call_operand.vmem [shape: f32[216,128], index: 1, kind: input, shape index: {}]
  %s2 = inlined_call_operand.vmem [shape: f32[1,128], index: 2, kind: input, shape index: {}]
  %s3 = inlined_call_operand.vmem [shape: f32[2,16,128], index: 3, kind: output, shape index: {}]
  %s4 = sld [smem:[#allocation0]]
  $region45: #{conv2d_block_forward.1} parent=0
    _
  %s6 = ssub.s32 1, %s4
  %s7 = scalar_select 0, %s6, %s4
  loop: start=0, step=1, limit=4
  $region2: #{conv2d_block_forward.1} parent=0 // loop_pre_header
    _
  $region3: #{conv2d_block_forward.1} parent=0 // loop_header
    %s9 = sphi 0, %s13
    %p10 = scmp.ge.s32.totalorder %s9, 4
    %s19 = sphi 0, %s21
    %s22 = sphi 0, %s19
    %s23 = sphi 0, %s22
    %s39 = sphi 0, %s23
    %s43 = sphi 0, %s43
    %s45 = sphi 0, %s43
    %s46 = sphi 0, %s45
    %s60 = sphi 0, %s46
    %s64 = sphi 0, %s64
    %s66 = sphi 0, %s64
    %s67 = sphi 0, %s66
    %s81 = sphi 0, %s67
    %s87 = sphi 0, %s89
    %s90 = sphi 0, %s87
    %s91 = sphi 0, %s90
    %s107 = sphi 0, %s91
  $region4: #{conv2d_block_forward.1} parent=0 // loop_header_branch
    %12 = sbr.rel (%p10) target = $region8
  $region5: #{conv2d_block_forward.1} parent=0 // loop_body
    %s14 = ssub.s32 %s9, 1
    %s15 = ssub.s32 %s9, 2
    %s16 = sadd.s32 %s9, 1
    %s17 = ssub.s32 %s9, %s16
    %p18 = scmp.eq.s32.totalorder %s17, 0
    %s20 = sadd.s32 %s19, 1
    %s21 = scalar_select %p18, %s19, %s20
    %p24 = pneg %p18
    %p25 = scmp.eq.s32.totalorder %s9, 1
    %p26 = por %p24, %p25
    %p27 = scmp.ne.s32.totalorder %s19, %s22
    %p28 = scmp.eq.s32.totalorder %s9, 0
    %p29 = por %p27, %p28
    %p30 = scmp.ne.s32.totalorder %s19, %s22
    %p31 = scmp.eq.s32.totalorder %s14, 1
    %p32 = por %p30, %p31
    %p33 = scmp.ne.s32.totalorder %s22, %s23
    %p34 = scmp.eq.s32.totalorder %s14, 0
    %p35 = por %p33, %p34
    %p36 = scmp.ne.s32.totalorder %s22, %s23
    %p37 = scmp.eq.s32.totalorder %s15, 1
    %p38 = por %p36, %p37
    %p40 = scmp.ne.s32.totalorder %s23, %s39
    %p41 = scmp.eq.s32.totalorder %s15, 0
    %p42 = por %p40, %p41
    %s44 = sadd.s32 %s43, 1
    %p47 = scmp.eq.s32.totalorder %s9, 1
    %p48 = scmp.ne.s32.totalorder %s43, %s45
    %p49 = scmp.eq.s32.totalorder %s9, 0
    %p50 = por %p48, %p49
    %p51 = scmp.ne.s32.totalorder %s43, %s45
    %p52 = scmp.eq.s32.totalorder %s14, 1
    %p53 = por %p51, %p52
    %p54 = scmp.ne.s32.totalorder %s45, %s46
    %p55 = scmp.eq.s32.totalorder %s14, 0
    %p56 = por %p54, %p55
    %p57 = scmp.ne.s32.totalorder %s45, %s46
    %p58 = scmp.eq.s32.totalorder %s15, 1
    %p59 = por %p57, %p58
    %p61 = scmp.ne.s32.totalorder %s46, %s60
    %p62 = scmp.eq.s32.totalorder %s15, 0
    %p63 = por %p61, %p62
    %s65 = sadd.s32 %s64, 1
    %p68 = scmp.eq.s32.totalorder %s9, 1
    %p69 = scmp.ne.s32.totalorder %s64, %s66
    %p70 = scmp.eq.s32.totalorder %s9, 0
    %p71 = por %p69, %p70
    %p72 = scmp.ne.s32.totalorder %s64, %s66
    %p73 = scmp.eq.s32.totalorder %s14, 1
    %p74 = por %p72, %p73
    %p75 = scmp.ne.s32.totalorder %s66, %s67
    %p76 = scmp.eq.s32.totalorder %s14, 0
    %p77 = por %p75, %p76
    %p78 = scmp.ne.s32.totalorder %s66, %s67
    %p79 = scmp.eq.s32.totalorder %s15, 1
    %p80 = por %p78, %p79
    %p82 = scmp.ne.s32.totalorder %s67, %s81
    %p83 = scmp.eq.s32.totalorder %s15, 0
    %p84 = por %p82, %p83
    %s85 = ssub.s32 %s9, %s16
    %p86 = scmp.eq.s32.totalorder %s85, 0
    %s88 = sadd.s32 %s87, 1
    %s89 = scalar_select %p86, %s87, %s88
    %p92 = pneg %p86
    %p93 = scmp.eq.s32.totalorder %s9, 1
    %p94 = por %p92, %p93
    %p95 = scmp.ne.s32.totalorder %s87, %s90
    %p96 = scmp.eq.s32.totalorder %s9, 0
    %p97 = por %p95, %p96
    %p98 = scmp.ne.s32.totalorder %s87, %s90
    %p99 = scmp.eq.s32.totalorder %s14, 1
    %p100 = por %p98, %p99
    %p101 = scmp.ne.s32.totalorder %s90, %s91
    %p102 = scmp.eq.s32.totalorder %s14, 0
    %p103 = por %p101, %p102
    %p104 = scmp.ne.s32.totalorder %s90, %s91
    %p105 = scmp.eq.s32.totalorder %s15, 1
    %p106 = por %p104, %p105
    %p108 = scmp.ne.s32.totalorder %s91, %s107
    %p109 = scmp.eq.s32.totalorder %s15, 0
    %p110 = por %p108, %p109
    %p111 = scmp.le.s32.totalorder 1, %s9
    %p112 = scmp.lt.s32.totalorder %s9, 3
    %p113 = pnand %p111, %p112
    %p114 = pneg %p113
    // Predicated region
    $region9: #{conv2d_block_forward.1} parent=5 // pred_check
      _
    $region10: #{conv2d_block_forward.1} parent=5 // pred_check_branch
      %116 = sbr.rel (%p113) target = $region12
    $region11: #{conv2d_block_forward.1} parent=5 // pred_region
      %s117 = ssub.s32 %s9, 1
      // Predicated region
      $region13: #{conv2d_block_forward.1} parent=11 // pred_check
        %p118 = pneg %p56
      $region14: #{conv2d_block_forward.1} parent=11 // pred_check_branch
        %120 = sbr.rel (%p118) target = $region16
      $region15: #{conv2d_block_forward.1} parent=11 // pred_region
        _
      $region16: #{conv2d_block_forward.1} parent=11 // pred_fallthru
        _
      // Predicated region
      $region17: #{conv2d_block_forward.1} parent=11 // pred_check
        %p121 = pneg %p77
      $region18: #{conv2d_block_forward.1} parent=11 // pred_check_branch
        %123 = sbr.rel (%p121) target = $region20
      $region19: #{conv2d_block_forward.1} parent=11 // pred_region
        _
      $region20: #{conv2d_block_forward.1} parent=11 // pred_fallthru
        _
    $region12: #{conv2d_block_forward.1} parent=5 // pred_fallthru
      _
    %p124 = scmp.lt.s32.totalorder %s9, 2
    // Predicated region
    $region21: #{conv2d_block_forward.1} parent=5 // pred_check
      %p125 = pneg %p124
    $region22: #{conv2d_block_forward.1} parent=5 // pred_check_branch
      %127 = sbr.rel (%p125) target = $region24
    $region23: #{conv2d_block_forward.1} parent=5 // pred_region
      // Predicated region
      $region25: #{conv2d_block_forward.1} parent=23 // pred_check
        %p128 = pneg %p29
      $region26: #{conv2d_block_forward.1} parent=23 // pred_check_branch
        %130 = sbr.rel (%p128) target = $region28
      $region27: #{conv2d_block_forward.1} parent=23 // pred_region
        %p131 = scmp.lt.s32.totalorder %s9, 1
        %s132 = scalar_select %p131, %s9, 1
        %s133 = smul.addr %s132, 3
        %s134 = smul.addr %s133, 8
        %s135 = scalar_lea.vmem %s0, %s134
      $region28: #{conv2d_block_forward.1} parent=23 // pred_fallthru
        _
    $region24: #{conv2d_block_forward.1} parent=5 // pred_fallthru
      _
    %p136 = scmp.le.s32.totalorder 1, %s9
    %p137 = scmp.lt.s32.totalorder %s9, 3
    %p138 = pnand %p136, %p137
    %p139 = pneg %p138
    // Predicated region
    $region29: #{conv2d_block_forward.1} parent=5 // pred_check
      _
    $region30: #{conv2d_block_forward.1} parent=5 // pred_check_branch
      %141 = sbr.rel (%p138) target = $region32
    $region31: #{conv2d_block_forward.1} parent=5 // pred_region
      %s142 = ssub.s32 %s9, 1
      %p143 = scmp.lt.s32.totalorder %s14, 1
      %s144 = scalar_select %p143, %s14, 1
      %s145 = smul.addr %s144, 3
      %s146 = smul.addr %s145, 8
      %s147 = scalar_lea.vmem %s0, %s146
      %p148 = pneg %p35
      %p149 = pneg %p32
      %p150 = pneg %p56
      %p151 = pneg %p53
      %p152 = pneg %p77
      %p153 = pneg %p74
      %p154 = pneg %p103
      %p155 = pneg %p100
      %p156 = scmp.lt.s32.totalorder %s14, 1
      %s157 = scalar_select %p156, %s14, 1
      %s158 = smul.addr %s157, 2
      %s159 = smul.addr %s158, 8
      %s160 = scalar_lea.vmem %s3, %s159
      %p161 = scmp.lt.s32.totalorder %s14, 1
      %s162 = scalar_select %p161, %s14, 1
      %s163 = smul.addr %s162, 3
      %s164 = smul.addr %s163, 8
      %s165 = scalar_lea.vmem %s0, %s164
      %p166 = scmp.lt.s32.totalorder %s14, 1
      %s167 = scalar_select %p166, %s14, 1
      %s168 = smul.addr %s167, 2
      %s169 = smul.addr %s168, 8
      %s170 = scalar_lea.vmem %s3, %s169
      %v171 = vld [vmem:[%s165] sm:$0xff]
      %v172 = vld [vmem:[%s165 + $0x8] sm:$0xff]
      %v173 = vld [vmem:[%s165 + $0x10] sm:$0x3]
      %v174 = vld [vmem:[%s1] sm:$0xff]
      %v175 = vld [vmem:[%s1 + $0x8] sm:$0xff]
      %v176 = vld [vmem:[%s1 + $0x10] sm:$0xff]
      %v177 = vld [vmem:[%s1 + $0x18] sm:$0xff]
      %v178 = vld [vmem:[%s1 + $0x20] sm:$0xff]
      %v179 = vld [vmem:[%s1 + $0x28] sm:$0xff]
      %v180 = vld [vmem:[%s1 + $0x30] sm:$0xff]
      %v181 = vld [vmem:[%s1 + $0x38] sm:$0xff]
      %v182 = vld [vmem:[%s1 + $0x40] sm:$0xff]
      %v183 = vld [vmem:[%s1 + $0x48] sm:$0xff]
      %v184 = vld [vmem:[%s1 + $0x50] sm:$0xff]
      %v185 = vld [vmem:[%s1 + $0x58] sm:$0xff]
      %v186 = vld [vmem:[%s1 + $0x60] sm:$0xff]
      %v187 = vld [vmem:[%s1 + $0x68] sm:$0xff]
      %v188 = vld [vmem:[%s1 + $0x70] sm:$0xff]
      %v189 = vld [vmem:[%s1 + $0x78] sm:$0xff]
      %v190 = vld [vmem:[%s1 + $0x80] sm:$0xff]
      %v191 = vld [vmem:[%s1 + $0x88] sm:$0xff]
      %vm195 = vcmask 1046528
      %v196 = vrot.slane %v171, 1
      %v197 = vrot.slane %v172, 1
      %v198 = vsel %vm195, %v196, %v197
      %v199 = vrot.slane %v173, 1
      %v200 = vsel %vm195, %v197, %v199
      %vm201 = vcmask 588800
      %v202 = vsel %vm201, %v198, 0
      %v204 = vsel %vm201, %v200, 0
      %206 = vmatprep.subr.mxu0 0.0
      %207 = vmatpush1.msra.mxu0 %v183
      %208 = vmatprep.subr.mxu0 0.0
      %209 = vmatpush1.msra.mxu0 %v184
      %210 = vmatprep.subr.mxu0 0.0
      %211 = vmatpush1.msra.mxu0 %v185
      %212 = vmatprep.subr.mxu0 0.0
      %213 = vmatpush1.msra.mxu0 %v186
      %214 = vmatprep.subr.mxu0 0.0
      %215 = vmatpush1.msra.mxu0 %v187
      %216 = vmatprep.subr.mxu0 0.0
      %217 = vmatpush1.msra.mxu0 %v188
      %218 = vmatprep.subr.mxu0 0.0
      %219 = vmatpush1.msra.mxu0 %v189
      %220 = vmatprep.subr.mxu0 0.0
      %221 = vmatpush1.msra.mxu0 %v190
      %222 = vmatprep.subr.mxu0 0.0
      %223 = vmatpush1.msra.mxu0 %v191
      %224 = vmatprep.subr.mxu0 0.0
      %225 = vmatpush1.msra.mxu0 0.0
      %226 = vmatprep.subr.mxu0 0.0
      %227 = vmatpush1.msra.mxu0 0.0
      %228 = vmatprep.subr.mxu0 0.0
      %229 = vmatpush1.msra.mxu0 0.0
      %230 = vmatprep.subr.mxu0 0.0
      %231 = vmatpush1.msra.mxu0 0.0
      %232 = vmatprep.subr.mxu0 0.0
      %233 = vmatpush1.msra.mxu0 0.0
      %234 = vmatprep.subr.mxu0 0.0
      %235 = vmatpush1.msra.mxu0 0.0
      %236 = vmatprep.subr.mxu0 0.0
      %237 = vmatpush1.msra.mxu0 0.0
      %238 = vmatprep.subr.mxu0 0.0
      %239 = vmatpush1.msra.mxu0 0.0
      %240 = vmatprep.subr.mxu0 0.0
      %241 = vmatpush1.msra.mxu0 0.0
      %242 = vmatprep.subr.mxu0 0.0
      %243 = vmatpush1.msra.mxu0 0.0
      %244 = vmatprep.subr.mxu0 0.0
      %245 = vmatpush1.msra.mxu0 0.0
      %246 = vmatprep.subr.mxu0 0.0
      %247 = vmatpush1.msra.mxu0 0.0
      %248 = vmatprep.subr.mxu0 0.0
      %249 = vmatpush1.msra.mxu0 0.0
      %250 = vmatprep.subr.mxu0 0.0
      %251 = vmatpush1.msra.mxu0 0.0
      %252 = vmatprep.subr.mxu0 0.0
      %253 = vmatpush1.msra.mxu0 0.0
      %254 = vmatprep.subr.mxu0 0.0
      %255 = vmatpush1.msra.mxu0 0.0
      %256 = vmatprep.subr.mxu0 0.0
      %257 = vmatpush1.msra.mxu0 0.0
      %258 = vmatprep.subr.mxu0 0.0
      %259 = vmatpush1.msra.mxu0 0.0
      %260 = vmatprep.subr.mxu0 0.0
      %261 = vmatpush1.msra.mxu0 0.0
      %262 = vmatprep.subr.mxu0 0.0
      %263 = vmatpush1.msra.mxu0 0.0
      %264 = vmatprep.subr.mxu0 0.0
      %265 = vmatpush1.msra.mxu0 0.0
      %266 = vmatprep.subr.mxu0 0.0
      %267 = vmatpush1.msra.mxu0 0.0
      %268 = vmatprep.subr.mxu0 0.0
      %269 = vmatpush1.msra.mxu0 0.0
      %270 = vmatprep.mubr.f32.mxu0 0.0
      %271 = vmatmul.mubr.f32.gmra.mrb[0].mxu0 %v202
      %v272 = vpop.f32.mrb[0].mxu0
      %v273 = vadd.f32 0.0, %v272
      %v274 = vpop.f32.mrb[0].mxu0
      %275 = vmatprep.mubr.f32.mxu0 0.0
      %276 = vmatmul.mubr.f32.gmra.mrb[0].mxu0 %v204
      %v277 = vpop.f32.mrb[0].mxu0
      %v278 = vadd.f32 0.0, %v277
      %v279 = vpop.f32.mrb[0].mxu0
      %280 = vdwg.mxu0
      %v281 = vsel %vm201, %v171, 0
      %v283 = vsel %vm201, %v172, 0
      %285 = vmatprep.subr.mxu0 0.0
      %286 = vmatpush1.msra.mxu0 %v174
      %287 = vmatprep.subr.mxu0 0.0
      %288 = vmatpush1.msra.mxu0 %v175
      %289 = vmatprep.subr.mxu0 0.0
      %290 = vmatpush1.msra.mxu0 %v176
      %291 = vmatprep.subr.mxu0 0.0
      %292 = vmatpush1.msra.mxu0 %v177
      %293 = vmatprep.subr.mxu0 0.0
      %294 = vmatpush1.msra.mxu0 %v178
      %295 = vmatprep.subr.mxu0 0.0
      %296 = vmatpush1.msra.mxu0 %v179
      %297 = vmatprep.subr.mxu0 0.0
      %298 = vmatpush1.msra.mxu0 %v180
      %299 = vmatprep.subr.mxu0 0.0
      %300 = vmatpush1.msra.mxu0 %v181
      %301 = vmatprep.subr.mxu0 0.0
      %302 = vmatpush1.msra.mxu0 %v182
      %303 = vmatprep.subr.mxu0 0.0
      %304 = vmatpush1.msra.mxu0 0.0
      %305 = vmatprep.subr.mxu0 0.0
      %306 = vmatpush1.msra.mxu0 0.0
      %307 = vmatprep.subr.mxu0 0.0
      %308 = vmatpush1.msra.mxu0 0.0
      %309 = vmatprep.subr.mxu0 0.0
      %310 = vmatpush1.msra.mxu0 0.0
      %311 = vmatprep.subr.mxu0 0.0
      %312 = vmatpush1.msra.mxu0 0.0
      %313 = vmatprep.subr.mxu0 0.0
      %314 = vmatpush1.msra.mxu0 0.0
      %315 = vmatprep.subr.mxu0 0.0
      %316 = vmatpush1.msra.mxu0 0.0
      %317 = vmatprep.subr.mxu0 0.0
      %318 = vmatpush1.msra.mxu0 0.0
      %319 = vmatprep.subr.mxu0 0.0
      %320 = vmatpush1.msra.mxu0 0.0
      %321 = vmatprep.subr.mxu0 0.0
      %322 = vmatpush1.msra.mxu0 0.0
      %323 = vmatprep.subr.mxu0 0.0
      %324 = vmatpush1.msra.mxu0 0.0
      %325 = vmatprep.subr.mxu0 0.0
      %326 = vmatpush1.msra.mxu0 0.0
      %327 = vmatprep.subr.mxu0 0.0
      %328 = vmatpush1.msra.mxu0 0.0
      %329 = vmatprep.subr.mxu0 0.0
      %330 = vmatpush1.msra.mxu0 0.0
      %331 = vmatprep.subr.mxu0 0.0
      %332 = vmatpush1.msra.mxu0 0.0
      %333 = vmatprep.subr.mxu0 0.0
      %334 = vmatpush1.msra.mxu0 0.0
      %335 = vmatprep.subr.mxu0 0.0
      %336 = vmatpush1.msra.mxu0 0.0
      %337 = vmatprep.subr.mxu0 0.0
      %338 = vmatpush1.msra.mxu0 0.0
      %339 = vmatprep.subr.mxu0 0.0
      %340 = vmatpush1.msra.mxu0 0.0
      %341 = vmatprep.subr.mxu0 0.0
      %342 = vmatpush1.msra.mxu0 0.0
      %343 = vmatprep.subr.mxu0 0.0
      %344 = vmatpush1.msra.mxu0 0.0
      %345 = vmatprep.subr.mxu0 0.0
      %346 = vmatpush1.msra.mxu0 0.0
      %347 = vmatprep.subr.mxu0 0.0
      %348 = vmatpush1.msra.mxu0 0.0
      %349 = vmatprep.mubr.f32.mxu0 0.0
      %350 = vmatmul.mubr.f32.gmra.mrb[0].mxu0 %v281
      %v351 = vpop.f32.mrb[0].mxu0
      %v352 = vadd.f32 %v273, %v351
      %v353 = vpop.f32.mrb[0].mxu0
      %354 = vmatprep.mubr.f32.mxu0 0.0
      %355 = vmatmul.mubr.f32.gmra.mrb[0].mxu0 %v283
      %v356 = vpop.f32.mrb[0].mxu0
      %v357 = vadd.f32 %v278, %v356
      %v358 = vpop.f32.mrb[0].mxu0
      %359 = vdwg.mxu0
      %v360 = vld [vmem:[%s1 + $0x90] sm:$0xff]
      %v361 = vld [vmem:[%s1 + $0x98] sm:$0xff]
      %v362 = vld [vmem:[%s1 + $0xa0] sm:$0xff]
      %v363 = vld [vmem:[%s1 + $0xa8] sm:$0xff]
      %v364 = vld [vmem:[%s1 + $0xb0] sm:$0xff]
      %v365 = vld [vmem:[%s1 + $0xb8] sm:$0xff]
      %v366 = vld [vmem:[%s1 + $0xc0] sm:$0xff]
      %v367 = vld [vmem:[%s1 + $0xc8] sm:$0xff]
      %v368 = vld [vmem:[%s1 + $0xd0] sm:$0xff]
      %vm369 = vcmask 1045504
      %v370 = vrot.slane %v171, 2
      %v371 = vrot.slane %v172, 2
      %v372 = vsel %vm369, %v370, %v371
      %v373 = vrot.slane %v173, 2
      %v374 = vsel %vm369, %v371, %v373
      %v375 = vsel %vm201, %v372, 0
      %v377 = vsel %vm201, %v374, 0
      %379 = vmatprep.subr.mxu0 0.0
      %380 = vmatpush1.msra.mxu0 %v360
      %381 = vmatprep.subr.mxu0 0.0
      %382 = vmatpush1.msra.mxu0 %v361
      %383 = vmatprep.subr.mxu0 0.0
      %384 = vmatpush1.msra.mxu0 %v362
      %385 = vmatprep.subr.mxu0 0.0
      %386 = vmatpush1.msra.mxu0 %v363
      %387 = vmatprep.subr.mxu0 0.0
      %388 = vmatpush1.msra.mxu0 %v364
      %389 = vmatprep.subr.mxu0 0.0
      %390 = vmatpush1.msra.mxu0 %v365
      %391 = vmatprep.subr.mxu0 0.0
      %392 = vmatpush1.msra.mxu0 %v366
      %393 = vmatprep.subr.mxu0 0.0
      %394 = vmatpush1.msra.mxu0 %v367
      %395 = vmatprep.subr.mxu0 0.0
      %396 = vmatpush1.msra.mxu0 %v368
      %397 = vmatprep.subr.mxu0 0.0
      %398 = vmatpush1.msra.mxu0 0.0
      %399 = vmatprep.subr.mxu0 0.0
      %400 = vmatpush1.msra.mxu0 0.0
      %401 = vmatprep.subr.mxu0 0.0
      %402 = vmatpush1.msra.mxu0 0.0
      %403 = vmatprep.subr.mxu0 0.0
      %404 = vmatpush1.msra.mxu0 0.0
      %405 = vmatprep.subr.mxu0 0.0
      %406 = vmatpush1.msra.mxu0 0.0
      %407 = vmatprep.subr.mxu0 0.0
      %408 = vmatpush1.msra.mxu0 0.0
      %409 = vmatprep.subr.mxu0 0.0
      %410 = vmatpush1.msra.mxu0 0.0
      %411 = vmatprep.subr.mxu0 0.0
      %412 = vmatpush1.msra.mxu0 0.0
      %413 = vmatprep.subr.mxu0 0.0
      %414 = vmatpush1.msra.mxu0 0.0
      %415 = vmatprep.subr.mxu0 0.0
      %416 = vmatpush1.msra.mxu0 0.0
      %417 = vmatprep.subr.mxu0 0.0
      %418 = vmatpush1.msra.mxu0 0.0
      %419 = vmatprep.subr.mxu0 0.0
      %420 = vmatpush1.msra.mxu0 0.0
      %421 = vmatprep.subr.mxu0 0.0
      %422 = vmatpush1.msra.mxu0 0.0
      %423 = vmatprep.subr.mxu0 0.0
      %424 = vmatpush1.msra.mxu0 0.0
      %425 = vmatprep.subr.mxu0 0.0
      %426 = vmatpush1.msra.mxu0 0.0
      %427 = vmatprep.subr.mxu0 0.0
      %428 = vmatpush1.msra.mxu0 0.0
      %429 = vmatprep.subr.mxu0 0.0
      %430 = vmatpush1.msra.mxu0 0.0
      %431 = vmatprep.subr.mxu0 0.0
      %432 = vmatpush1.msra.mxu0 0.0
      %433 = vmatprep.subr.mxu0 0.0
      %434 = vmatpush1.msra.mxu0 0.0
      %435 = vmatprep.subr.mxu0 0.0
      %436 = vmatpush1.msra.mxu0 0.0
      %437 = vmatprep.subr.mxu0 0.0
      %438 = vmatpush1.msra.mxu0 0.0
      %439 = vmatprep.subr.mxu0 0.0
      %440 = vmatpush1.msra.mxu0 0.0
      %441 = vmatprep.subr.mxu0 0.0
      %442 = vmatpush1.msra.mxu0 0.0
      %443 = vmatprep.mubr.f32.mxu0 0.0
      %444 = vmatmul.mubr.f32.gmra.mrb[0].mxu0 %v375
      %v445 = vpop.f32.mrb[0].mxu0
      %v446 = vadd.f32 0.0, %v445
      %v447 = vpop.f32.mrb[0].mxu0
      %448 = vmatprep.mubr.f32.mxu0 0.0
      %449 = vmatmul.mubr.f32.gmra.mrb[0].mxu0 %v377
      %v450 = vpop.f32.mrb[0].mxu0
      %v451 = vadd.f32 0.0, %v450
      %v452 = vpop.f32.mrb[0].mxu0
      %453 = vdwg.mxu0
      %v454 = vadd.f32 %v352, %v446
      %v455 = vadd.f32 %v357, %v451
      %v456 = vld [vmem:[%s2] sm:$0x1]
      %v458 = vlaneseq
      %v459 = vshrl.u32 %v458, 7
      %v460 = vsub.s32 0, %v459
      %v461 = vrot.slane %v456, %v460
      %v463 = vadd.f32 %v454, %v461
      %v464 = vadd.f32 %v455, %v461
      %v465 = vmax.f32 %v463, 0.0
      %v466 = vmax.f32 %v464, 0.0
      %467 = vst [vmem:[%s170] sm:$0xff] %v465
      %468 = vst [vmem:[%s170 + $0x8] sm:$0xff] %v466
      %p469 = scmp.lt.s32.totalorder %s14, 1
      %s470 = scalar_select %p469, %s14, 1
      %s471 = smul.addr %s470, 2
      %s472 = smul.addr %s471, 8
      %s473 = scalar_lea.vmem %s3, %s472
      // Predicated region
      $region33: #{conv2d_block_forward.1} parent=31 // pred_check
        %p474 = pneg %p100
      $region34: #{conv2d_block_forward.1} parent=31 // pred_check_branch
        %476 = sbr.rel (%p474) target = $region36
      $region35: #{conv2d_block_forward.1} parent=31 // pred_region
        _
      $region36: #{conv2d_block_forward.1} parent=31 // pred_fallthru
        _
    $region32: #{conv2d_block_forward.1} parent=5 // pred_fallthru
      _
    %p477 = scmp.le.s32.totalorder 2, %s9
    // Predicated region
    $region37: #{conv2d_block_forward.1} parent=5 // pred_check
      %p478 = pneg %p477
    $region38: #{conv2d_block_forward.1} parent=5 // pred_check_branch
      %480 = sbr.rel (%p478) target = $region40
    $region39: #{conv2d_block_forward.1} parent=5 // pred_region
      %s481 = ssub.s32 %s9, 2
      // Predicated region
      $region41: #{conv2d_block_forward.1} parent=39 // pred_check
        %p482 = pneg %p106
      $region42: #{conv2d_block_forward.1} parent=39 // pred_check_branch
        %484 = sbr.rel (%p482) target = $region44
      $region43: #{conv2d_block_forward.1} parent=39 // pred_region
        %p485 = scmp.lt.s32.totalorder %s15, 1
        %s486 = scalar_select %p485, %s15, 1
        %s487 = smul.addr %s486, 2
        %s488 = smul.addr %s487, 8
        %s489 = scalar_lea.vmem %s3, %s488
      $region44: #{conv2d_block_forward.1} parent=39 // pred_fallthru
        _
    $region40: #{conv2d_block_forward.1} parent=5 // pred_fallthru
      _
  $region6: #{conv2d_block_forward.1} parent=0 // loop_footer
    %s13 = sadd.s32 1, %s9
  $region7: #{conv2d_block_forward.1} parent=0 // loop_footer_branch
    %8 = sbr.rel target = $region3
  $region8: #{conv2d_block_forward.1} parent=0 // loop_exit
    _

</llo_original>
